<compile_context>
chip_gen: v7x
topology: tpu7x:2x2x1
jax: 0.10.0
libtpu: 0.0.40
codegen_flags: <defaults>
</compile_context>

<pallas_src>
import functools

import jax
import jax.numpy as jnp
from jax.experimental import pallas as pl
from jax.experimental.pallas import tpu as pltpu

_SMALL_BYTES = 1 << 20  # below this, fused XLA logsumexp beats kernel overhead


# ---------------------------------------------------------------------------
# Pallas kernel: one row-tile of sum-reduced cross entropy.
# Each grid step writes its own lane-dense partial-sum block, so the single
# grid axis is "parallel" (megacore-safe on v7x).
# ---------------------------------------------------------------------------
def _ce_sum_kernel(logits_ref, picked_ref, w_ref, out_ref, *, exp_in_bf16):
    logits = logits_ref[...].astype(jnp.float32)      # (TN, C): native dtype in HBM, f32 cast in VMEM

    # numerically-stable log-sum-exp per row
    row_max = jnp.max(logits, axis=-1, keepdims=True)                       # (TN, 1)
    shifted = logits - row_max
    if exp_in_bf16:
        # Optional EUP relief on v6e/v7x (single EUP unit; bf16 ~2x exp tput).
        # Off by default: ~1e-3 rel error in lse.  Keep f32 on v5e (no bf16 EUP).
        e = jnp.exp(shifted.astype(jnp.bfloat16)).astype(jnp.float32)
    else:
        e = jnp.exp(shifted)
    lse = row_max + jnp.log(jnp.sum(e, axis=-1, keepdims=True))             # (TN, 1)

    # Ragged-tail rows (past the logical end of logits) see stale VMEM, so
    # lse may be Inf/NaN there.  w == 0 for both tail rows and
    # ignore_index rows; use a SELECT (not a multiply) so the unselected
    # Inf/NaN branch cannot propagate (jnp.where select semantics on TPU).
    per_row = jnp.where(w_ref[...] > 0.0, lse - picked_ref[...], 0.0)       # (TN, 1)
    out_ref[...] = jnp.broadcast_to(jnp.sum(per_row), out_ref.shape)        # (1, 8, 128)


def _choose_tile_rows(n_rows, n_classes, max_tile_rows=512,
                      f32_tile_bytes=2 * 1024 * 1024):
    """Largest multiple-of-8 row tile with a logical f32 tile <= ~2 MiB.

    Actual live VMEM is ~6-8x the logical tile (2x double-buffered native
    input + several full-tile f32 temporaries), i.e. ~12-16 MiB, covered by
    the explicit vmem_limit_bytes below.  ~512-row blocks already reach ~85%
    of the HBM roofline, so larger tiles buy almost nothing.
    """
    c_pad = max(128, ((n_classes + 127) // 128) * 128)
    rows_by_vmem = max(8, f32_tile_bytes // (c_pad * 4))
    t = min(max_tile_rows, rows_by_vmem, ((n_rows + 7) // 8) * 8)
    t = max(8, (t // 8) * 8)
    # v7x has 2 TensorCores: keep >=4 grid steps so the "parallel" axis can
    # be sharded with reasonable balance (harmless on single-TC v5e/v6e).
    while t > 8 and (n_rows + t - 1) // t < 4:
        t = max(8, ((t // 2) // 8) * 8)
    return t


def _ce_sum_jax(logits, labels, ignore_index):
    """Pure-XLA path for tiny problems (and reference)."""
    logits = logits.astype(jnp.float32)
    lse = jax.nn.logsumexp(logits, axis=-1)
    valid = labels != ignore_index
    safe = jnp.where(valid, labels, 0)
    picked = jnp.take_along_axis(logits, safe[:, None], axis=-1)[:, 0]
    return jnp.sum(jnp.where(valid, lse - picked, 0.0))


def cross_entropy_sum(logits, labels, ignore_index=-100, tile_rows=None,
                      exp_in_bf16=False):
    """sum_i [label_i != ignore_index] * (logsumexp(logits_i) - logits_i[label_i])

    logits: (N, C), any float dtype (kept in native dtype in HBM, cast in VMEM)
    labels: (N,), integer
    """
    n, c = logits.shape
    labels = labels.astype(jnp.int32)
    itemsize = jnp.dtype(logits.dtype).itemsize

    # Small-problem early out: per-step (~0.35 us) + launch overhead dominates.
    if tile_rows is None and n * c * itemsize < _SMALL_BYTES:
        return _ce_sum_jax(logits, labels, ignore_index)

    if tile_rows is None:
        tile_rows = _choose_tile_rows(n, c)
    num_tiles = pl.cdiv(n, tile_rows)
    n_pad = num_tiles * tile_rows

    # Hoisted O(N) work (cheap XLA ops): label pick + validity weight,
    # zero-padded to the tile grid so ragged-tail rows carry w == 0.
    valid = labels != ignore_index
    safe = jnp.where(valid, labels, 0)
    picked = jnp.take_along_axis(logits, safe[:, None], axis=-1).astype(jnp.float32)
    w = valid.astype(jnp.float32)[:, None]
    if n_pad != n:
        picked = jnp.pad(picked, ((0, n_pad - n), (0, 0)))
        w = jnp.pad(w, ((0, n_pad - n), (0, 0)))

    cost = pl.CostEstimate(
        flops=5 * n * c,
        transcendentals=n * c,
        bytes_accessed=n * c * itemsize + 2 * n_pad * 4 + num_tiles * 8 * 128 * 4,
    )

    partials = pl.pallas_call(
        functools.partial(_ce_sum_kernel, exp_in_bf16=exp_in_bf16),
        out_shape=jax.ShapeDtypeStruct((num_tiles, 8, 128), jnp.float32),
        grid=(num_tiles,),
        in_specs=[
            pl.BlockSpec((tile_rows, c), lambda i: (i, 0)),
            pl.BlockSpec((tile_rows, 1), lambda i: (i, 0)),
            pl.BlockSpec((tile_rows, 1), lambda i: (i, 0)),
        ],
        out_specs=pl.BlockSpec((1, 8, 128), lambda i: (i, 0, 0)),
        compiler_params=pltpu.CompilerParams(
            dimension_semantics=("parallel",),
            vmem_limit_bytes=32 * 1024 * 1024),
        cost_estimate=cost,
    )(logits, picked, w)

    return jnp.sum(partials[:, 0, 0])


# ---------------------------------------------------------------------------
# Module-equivalent wrapper
# ---------------------------------------------------------------------------
class HuBERTPretrainingLoss:
    def __init__(self, label_pad_index=-100, pred_masked_weight=1.0,
                 pred_nomask_weight=0.0):
        self.label_pad_index = label_pad_index
        self.pred_masked_weight = pred_masked_weight
        self.pred_nomask_weight = pred_nomask_weight

    def _gather_labels(self, flat_labels, flat_mask, n_sel):
        # Static-size boolean gather (JAX needs static shapes).  Any padded
        # slot (if the static n_sel exceeds the runtime mask count) is filled
        # with ignore_index so it contributes zero loss.
        idx = jnp.nonzero(flat_mask, size=n_sel, fill_value=-1)[0]
        gathered = flat_labels[jnp.maximum(idx, 0)]
        return jnp.where(idx >= 0, gathered, self.label_pad_index)

    def __call__(self, logits_m, logits_u, masks_for_modeling, ptlabels_padded):
        loss = jnp.float32(0.0)
        flat_labels = ptlabels_padded.reshape(-1)
        flat_mask = masks_for_modeling.reshape(-1)

        if logits_m is not None and self.pred_masked_weight > 0:
            labels_m = self._gather_labels(flat_labels, flat_mask,
                                           logits_m.shape[0])
            loss = loss + self.pred_masked_weight * cross_entropy_sum(
                logits_m, labels_m, self.label_pad_index)

        if logits_u is not None and self.pred_nomask_weight > 0:
            labels_u = self._gather_labels(flat_labels, ~flat_mask,
                                           logits_u.shape[0])
            loss = loss + self.pred_nomask_weight * cross_entropy_sum(
                logits_u, labels_u, self.label_pad_index)

        return loss


# ---------------------------------------------------------------------------
# Pure-JAX reference (mirrors torch.nn.CrossEntropyLoss(reduction='sum',
# ignore_index=...)) used only to check the kernel.
# ---------------------------------------------------------------------------
def _ce_sum_ref(logits, labels, ignore_index=-100):
    return _ce_sum_jax(logits, labels, ignore_index)


if __name__ == "__main__":
    key = jax.random.PRNGKey(0)

    # ---- module-level test (B=2, T=8, C=32; tiny -> early-out path) --------
    B, T, C = 2, 8, 32
    masks_for_modeling = (jnp.arange(B * T) % 2 == 0).reshape(B, T)
    n_masked = int(jnp.sum(masks_for_modeling))      # = 8 (static here)

    k1, k2, k3 = jax.random.split(key, 3)
    ptlabels_padded = jax.random.randint(k1, (B, T), 0, C, dtype=jnp.int32)
    # sprinkle padding labels (-100) to exercise ignore_index
    ptlabels_padded = ptlabels_padded.at[0, 0].set(-100).at[1, 3].set(-100)

    logits_m = jax.random.normal(k2, (n_masked, C), dtype=jnp.float32)
    logits_u = None   # pred_nomask_weight == 0.0 -> branch skipped, as in PyTorch

    loss_fn = HuBERTPretrainingLoss()
    loss = jax.block_until_ready(
        loss_fn(logits_m, logits_u, masks_for_modeling, ptlabels_padded))

    idx = jnp.nonzero(masks_for_modeling.reshape(-1), size=n_masked)[0]
    labels_m = ptlabels_padded.reshape(-1)[idx]
    ref = _ce_sum_ref(logits_m, labels_m)
    assert jnp.allclose(loss, ref, rtol=1e-5, atol=1e-5), (loss, ref)

    # ---- kernel test 1: multi-tile grid + ragged tail + bf16 in HBM --------
    N2, C2, TILE = 300, 256, 128
    k4, k5, k6 = jax.random.split(k3, 3)
    logits2 = jax.random.normal(k4, (N2, C2), dtype=jnp.float32).astype(jnp.bfloat16)
    labels2 = jax.random.randint(k5, (N2,), 0, C2, dtype=jnp.int32)
    labels2 = labels2.at[7].set(-100).at[123].set(-100).at[299].set(-100)

    got = jax.block_until_ready(cross_entropy_sum(logits2, labels2, tile_rows=TILE))
    want = _ce_sum_ref(logits2.astype(jnp.float32), labels2)
    assert jnp.allclose(got, want, rtol=1e-4, atol=1e-3), (got, want)

    # ---- kernel test 2: auto tiling, C not a multiple of 128, ragged N -----
    N3, C3 = 1003, 500
    k7, k8 = jax.random.split(k6)
    logits3 = jax.random.normal(k7, (N3, C3), dtype=jnp.float32)
    labels3 = jax.random.randint(k8, (N3,), 0, C3, dtype=jnp.int32)
    labels3 = labels3.at[0].set(-100).at[500].set(-100).at[1002].set(-100)

    got3 = jax.block_until_ready(cross_entropy_sum(logits3, labels3))
    want3 = _ce_sum_ref(logits3, labels3)
    assert jnp.allclose(got3, want3, rtol=1e-4, atol=1e-2), (got3, want3)

    print("KERNEL_OK")
</pallas_src>

<mosaic_0001>
module attributes {stable_mosaic.version = 11 : i64} {
  func.func @_ce_sum_kernel(%arg0: i32, %arg1: memref<128x256xbf16, #tpu.memory_space<vmem>>, %arg2: memref<128x1xf32, #tpu.memory_space<vmem>>, %arg3: memref<128x1xf32, #tpu.memory_space<vmem>>, %arg4: memref<1x8x128xf32, #tpu.memory_space<vmem>>) attributes {dimension_semantics = [#tpu.dimension_semantics<parallel>], iteration_bounds = array<i64: 3>, scalar_prefetch = 0 : i64, scratch_operands = 0 : i64, tpu.core_type = #tpu.core_type<tc>, window_params = [{transform_indices = @transform_0, window_bounds = array<i64: 128, 256>}, {transform_indices = @transform_1, window_bounds = array<i64: 128, 1>}, {transform_indices = @transform_2, window_bounds = array<i64: 128, 1>}, {transform_indices = @transform_3, window_bounds = array<i64: 1, 8, 128>}]} {
    %c0 = arith.constant 0 : index
    %c0_0 = arith.constant 0 : index
    %0 = vector.load %arg1[%c0, %c0_0] : memref<128x256xbf16, #tpu.memory_space<vmem>>, vector<128x256xbf16>
    %1 = arith.extf %0 : vector<128x256xbf16> to vector<128x256xf32>
    %cst = arith.constant dense<0xFF800000> : vector<128xf32>
    %2 = vector.multi_reduction <maximumf>, %1, %cst [1] : vector<128x256xf32> to vector<128xf32>
    %3 = vector.shape_cast %2 : vector<128xf32> to vector<128x1xf32>
    %4 = vector.broadcast %3 : vector<128x1xf32> to vector<128x256xf32>
    %5 = arith.subf %1, %4 : vector<128x256xf32>
    %6 = math.exp %5 : vector<128x256xf32>
    %cst_1 = arith.constant dense<0.000000e+00> : vector<128xf32>
    %7 = vector.multi_reduction <add>, %6, %cst_1 [1] : vector<128x256xf32> to vector<128xf32>
    %8 = vector.shape_cast %7 : vector<128xf32> to vector<128x1xf32>
    %9 = math.log %8 : vector<128x1xf32>
    %10 = arith.addf %3, %9 : vector<128x1xf32>
    %c0_2 = arith.constant 0 : index
    %c0_3 = arith.constant 0 : index
    %11 = vector.load %arg3[%c0_2, %c0_3] : memref<128x1xf32, #tpu.memory_space<vmem>>, vector<128x1xf32>
    %cst_4 = arith.constant 0.000000e+00 : f32
    %12 = vector.broadcast %cst_4 : f32 to vector<128x1xf32>
    %13 = arith.cmpf ogt, %11, %12 : vector<128x1xf32>
    %c0_5 = arith.constant 0 : index
    %c0_6 = arith.constant 0 : index
    %14 = vector.load %arg2[%c0_5, %c0_6] : memref<128x1xf32, #tpu.memory_space<vmem>>, vector<128x1xf32>
    %15 = arith.subf %10, %14 : vector<128x1xf32>
    %cst_7 = arith.constant 0.000000e+00 : f32
    %16 = vector.broadcast %cst_7 : f32 to vector<128x1xf32>
    %17 = arith.select %13, %15, %16 : vector<128x1xi1>, vector<128x1xf32>
    %18 = vector.shape_cast %17 : vector<128x1xf32> to vector<1x128x1xf32>
    %cst_8 = arith.constant dense<0.000000e+00> : vector<1xf32>
    %19 = vector.multi_reduction <add>, %18, %cst_8 [1, 2] : vector<1x128x1xf32> to vector<1xf32>
    %20 = vector.shape_cast %19 : vector<1xf32> to vector<1x1x1xf32>
    %21 = vector.extract %20[0, 0, 0] : f32 from vector<1x1x1xf32>
    %22 = vector.broadcast %21 : f32 to vector<1x8x128xf32>
    %c0_9 = arith.constant 0 : index
    %c0_10 = arith.constant 0 : index
    %c0_11 = arith.constant 0 : index
    %23 = vector.load %arg4[%c0_9, %c0_10, %c0_11] : memref<1x8x128xf32, #tpu.memory_space<vmem>>, vector<1x8x128xf32>
    tpu.vector_store %arg4[%c0_9, %c0_10, %c0_11], %22 {strides = array<i32>} : memref<1x8x128xf32, #tpu.memory_space<vmem>>, vector<1x8x128xf32>,
    return
  }
  func.func @transform_0(%arg0: i32) -> (i32, i32) {
    %c0_i32 = arith.constant 0 : i32
    %c0_i32_0 = arith.constant 0 : i32
    return %arg0, %c0_i32 : i32, i32
  }
  func.func @transform_1(%arg0: i32) -> (i32, i32) {
    %c0_i32 = arith.constant 0 : i32
    %c0_i32_0 = arith.constant 0 : i32
    return %arg0, %c0_i32 : i32, i32
  }
  func.func @transform_2(%arg0: i32) -> (i32, i32) {
    %c0_i32 = arith.constant 0 : i32
    %c0_i32_0 = arith.constant 0 : i32
    return %arg0, %c0_i32 : i32, i32
  }
  func.func @transform_3(%arg0: i32) -> (i32, i32, i32) {
    %c0_i32 = arith.constant 0 : i32
    %c0_i32_0 = arith.constant 0 : i32
    %c0_i32_1 = arith.constant 0 : i32
    return %arg0, %c0_i32, %c0_i32_0 : i32, i32, i32
  }
}

</mosaic_0001>

<llo_original>
// kernel: tpu_custom_call.1
$region0: #{tpu_custom_call.1}
  #allocation0 [shape = 'u32[]', space=smem, size = 0x4, offset = 0x4, fixed_abs, tag = 'smem constant byte address 0x4 - core index']
  #allocation1 [shape = 'u32[144,128]{1,0:T(1,128)}', space=vmem, size = 0x12000, scoped, tag = 'internal scratch']
  %s0 = inlined_call_operand.vmem [shape: bf16[300,256], index: 0, kind: input, shape index: {}]
  %s1 = inlined_call_operand.vmem [shape: f32[384,1], index: 1, kind: input, shape index: {}]
  %s2 = inlined_call_operand.vmem [shape: f32[384,1], index: 2, kind: input, shape index: {}]
  %s3 = inlined_call_operand.hbm [shape: f32[3,8,128], index: 3, kind: output, shape index: {}]
  %s4 = sld [smem:[#allocation0]]
  $region45: #{tpu_custom_call.1} parent=0
    _
  %s6 = ssub.s32 1, %s4
  %s7 = scalar_select 0, %s6, %s4
  $region1: #{tpu_custom_call.1} parent=0
    #allocation2 [shape = 'u8[8192]{0}', space=vmem, size = 0x2000, scoped, tag = 'output window, operand 0']
    #allocation3 [shape = 's32[2]{0}', space=sflag, size = 0x8, scoped, tag = 'scoped memory for tpu_custom_call.1']
    %8 = vsyncpa [#allocation3], 0
    %s9 = scalar_lea.sflag [#allocation3], 1
    %10 = vsyncpa %s9, 0
    loop: start=0, step=1, limit=5
    $region2: #{tpu_custom_call.1} parent=1 // loop_pre_header
      _
    $region3: #{tpu_custom_call.1} parent=1 // loop_header
      %s12 = sphi 0, %s16
      %p13 = scmp.ge.s32.totalorder %s12, 5
      %s22 = sphi 0, %s24
      %s25 = sphi 0, %s22
      %s26 = sphi 0, %s25
      %s42 = sphi 0, %s26
      %s48 = sphi 0, %s50
      %s51 = sphi 0, %s48
      %s52 = sphi 0, %s51
      %s68 = sphi 0, %s52
      %s74 = sphi 0, %s76
      %s77 = sphi 0, %s74
      %s78 = sphi 0, %s77
      %s94 = sphi 0, %s78
      %s100 = sphi 0, %s102
      %s103 = sphi 0, %s100
      %s104 = sphi 0, %s103
      %s120 = sphi 0, %s104
    $region4: #{tpu_custom_call.1} parent=1 // loop_header_branch
      %15 = sbr.rel (%p13) target = $region8
    $region5: #{tpu_custom_call.1} parent=1 // loop_body
      %s17 = ssub.s32 %s12, 1
      %s18 = ssub.s32 %s12, 2
      %s19 = sadd.s32 %s12, 1
      %s20 = ssub.s32 %s12, %s19
      %p21 = scmp.eq.s32.totalorder %s20, 0
      %s23 = sadd.s32 %s22, 1
      %s24 = scalar_select %p21, %s22, %s23
      %p27 = pneg %p21
      %p28 = scmp.eq.s32.totalorder %s12, 2
      %p29 = por %p27, %p28
      %p30 = scmp.ne.s32.totalorder %s22, %s25
      %p31 = scmp.eq.s32.totalorder %s12, 0
      %p32 = por %p30, %p31
      %p33 = scmp.ne.s32.totalorder %s22, %s25
      %p34 = scmp.eq.s32.totalorder %s17, 2
      %p35 = por %p33, %p34
      %p36 = scmp.ne.s32.totalorder %s25, %s26
      %p37 = scmp.eq.s32.totalorder %s17, 0
      %p38 = por %p36, %p37
      %p39 = scmp.ne.s32.totalorder %s25, %s26
      %p40 = scmp.eq.s32.totalorder %s18, 2
      %p41 = por %p39, %p40
      %p43 = scmp.ne.s32.totalorder %s26, %s42
      %p44 = scmp.eq.s32.totalorder %s18, 0
      %p45 = por %p43, %p44
      %s46 = ssub.s32 %s12, %s19
      %p47 = scmp.eq.s32.totalorder %s46, 0
      %s49 = sadd.s32 %s48, 1
      %s50 = scalar_select %p47, %s48, %s49
      %p53 = pneg %p47
      %p54 = scmp.eq.s32.totalorder %s12, 2
      %p55 = por %p53, %p54
      %p56 = scmp.ne.s32.totalorder %s48, %s51
      %p57 = scmp.eq.s32.totalorder %s12, 0
      %p58 = por %p56, %p57
      %p59 = scmp.ne.s32.totalorder %s48, %s51
      %p60 = scmp.eq.s32.totalorder %s17, 2
      %p61 = por %p59, %p60
      %p62 = scmp.ne.s32.totalorder %s51, %s52
      %p63 = scmp.eq.s32.totalorder %s17, 0
      %p64 = por %p62, %p63
      %p65 = scmp.ne.s32.totalorder %s51, %s52
      %p66 = scmp.eq.s32.totalorder %s18, 2
      %p67 = por %p65, %p66
      %p69 = scmp.ne.s32.totalorder %s52, %s68
      %p70 = scmp.eq.s32.totalorder %s18, 0
      %p71 = por %p69, %p70
      %s72 = ssub.s32 %s12, %s19
      %p73 = scmp.eq.s32.totalorder %s72, 0
      %s75 = sadd.s32 %s74, 1
      %s76 = scalar_select %p73, %s74, %s75
      %p79 = pneg %p73
      %p80 = scmp.eq.s32.totalorder %s12, 2
      %p81 = por %p79, %p80
      %p82 = scmp.ne.s32.totalorder %s74, %s77
      %p83 = scmp.eq.s32.totalorder %s12, 0
      %p84 = por %p82, %p83
      %p85 = scmp.ne.s32.totalorder %s74, %s77
      %p86 = scmp.eq.s32.totalorder %s17, 2
      %p87 = por %p85, %p86
      %p88 = scmp.ne.s32.totalorder %s77, %s78
      %p89 = scmp.eq.s32.totalorder %s17, 0
      %p90 = por %p88, %p89
      %p91 = scmp.ne.s32.totalorder %s77, %s78
      %p92 = scmp.eq.s32.totalorder %s18, 2
      %p93 = por %p91, %p92
      %p95 = scmp.ne.s32.totalorder %s78, %s94
      %p96 = scmp.eq.s32.totalorder %s18, 0
      %p97 = por %p95, %p96
      %s98 = ssub.s32 %s12, %s19
      %p99 = scmp.eq.s32.totalorder %s98, 0
      %s101 = sadd.s32 %s100, 1
      %s102 = scalar_select %p99, %s100, %s101
      %p105 = pneg %p99
      %p106 = scmp.eq.s32.totalorder %s12, 2
      %p107 = por %p105, %p106
      %p108 = scmp.ne.s32.totalorder %s100, %s103
      %p109 = scmp.eq.s32.totalorder %s12, 0
      %p110 = por %p108, %p109
      %p111 = scmp.ne.s32.totalorder %s100, %s103
      %p112 = scmp.eq.s32.totalorder %s17, 2
      %p113 = por %p111, %p112
      %p114 = scmp.ne.s32.totalorder %s103, %s104
      %p115 = scmp.eq.s32.totalorder %s17, 0
      %p116 = por %p114, %p115
      %p117 = scmp.ne.s32.totalorder %s103, %s104
      %p118 = scmp.eq.s32.totalorder %s18, 2
      %p119 = por %p117, %p118
      %p121 = scmp.ne.s32.totalorder %s104, %s120
      %p122 = scmp.eq.s32.totalorder %s18, 0
      %p123 = por %p121, %p122
      %p124 = scmp.le.s32.totalorder 1, %s12
      %p125 = scmp.lt.s32.totalorder %s12, 4
      %p126 = pnand %p124, %p125
      %p127 = pneg %p126
      // Predicated region
      $region9: #{tpu_custom_call.1} parent=5 // pred_check
        _
      $region10: #{tpu_custom_call.1} parent=5 // pred_check_branch
        %129 = sbr.rel (%p126) target = $region12
      $region11: #{tpu_custom_call.1} parent=5 // pred_region
        %s130 = ssub.s32 %s12, 1
      $region12: #{tpu_custom_call.1} parent=5 // pred_fallthru
        _
      %p131 = scmp.lt.s32.totalorder %s12, 3
      // Predicated region
      $region13: #{tpu_custom_call.1} parent=5 // pred_check
        %p132 = pneg %p131
      $region14: #{tpu_custom_call.1} parent=5 // pred_check_branch
        %134 = sbr.rel (%p132) target = $region16
      $region15: #{tpu_custom_call.1} parent=5 // pred_region
        // Predicated region
        $region17: #{tpu_custom_call.1} parent=15 // pred_check
          %p135 = pneg %p32
        $region18: #{tpu_custom_call.1} parent=15 // pred_check_branch
          %137 = sbr.rel (%p135) target = $region20
        $region19: #{tpu_custom_call.1} parent=15 // pred_region
          %s138 = smul.u32 16, %s12
          %s139 = ssub.s32 38, %s138
          %p140 = scmp.lt.s32.totalorder %s139, 16
          %s141 = scalar_select %p140, %s139, 16
          %s142 = smul.u32 64, %s141
          %s143 = smul.u32 %s142, 2
          %p144 = scmp.lt.s32.totalorder %s138, 37
          %s145 = scalar_select %p144, %s138, 37
          %s146 = smul.addr %s145, 2
          %s147 = smul.addr %s146, 4
          %s148 = scalar_lea.vmem %s0, %s147
          %s149 = smul.u32 16, %s12
          %s150 = ssub.s32 38, %s149
          %p151 = scmp.lt.s32.totalorder %s150, 16
          %s152 = scalar_select %p151, %s150, 16
          %s153 = smul.u32 64, %s152
          %s154 = smul.u32 %s153, 2
        $region20: #{tpu_custom_call.1} parent=15 // pred_fallthru
          _
        // Predicated region
        $region21: #{tpu_custom_call.1} parent=15 // pred_check
          %p155 = pneg %p58
        $region22: #{tpu_custom_call.1} parent=15 // pred_check_branch
          %157 = sbr.rel (%p155) target = $region24
        $region23: #{tpu_custom_call.1} parent=15 // pred_region
          %s158 = smul.u32 16, %s12
          %p159 = scmp.lt.s32.totalorder %s158, 47
          %s160 = scalar_select %p159, %s158, 47
          %s161 = smul.addr %s160, 8
          %s162 = scalar_lea.vmem %s1, %s161
          %s163 = smul.u32 16, %s12
        $region24: #{tpu_custom_call.1} parent=15 // pred_fallthru
          _
        // Predicated region
        $region25: #{tpu_custom_call.1} parent=15 // pred_check
          %p164 = pneg %p84
        $region26: #{tpu_custom_call.1} parent=15 // pred_check_branch
          %166 = sbr.rel (%p164) target = $region28
        $region27: #{tpu_custom_call.1} parent=15 // pred_region
          %s167 = smul.u32 16, %s12
          %p168 = scmp.lt.s32.totalorder %s167, 47
          %s169 = scalar_select %p168, %s167, 47
          %s170 = smul.addr %s169, 8
          %s171 = scalar_lea.vmem %s2, %s170
          %s172 = smul.u32 16, %s12
        $region28: #{tpu_custom_call.1} parent=15 // pred_fallthru
          _
      $region16: #{tpu_custom_call.1} parent=5 // pred_fallthru
        _
      %p173 = scmp.le.s32.totalorder 1, %s12
      %p174 = scmp.lt.s32.totalorder %s12, 4
      %p175 = pnand %p173, %p174
      %p176 = pneg %p175
      // Predicated region
      $region29: #{tpu_custom_call.1} parent=5 // pred_check
        _
      $region30: #{tpu_custom_call.1} parent=5 // pred_check_branch
        %178 = sbr.rel (%p175) target = $region32
      $region31: #{tpu_custom_call.1} parent=5 // pred_region
        %s179 = ssub.s32 %s12, 1
        %s180 = smul.u32 16, %s17
        %s181 = ssub.s32 38, %s180
        %p182 = scmp.lt.s32.totalorder %s181, 16
        %s183 = scalar_select %p182, %s181, 16
        %s184 = smul.u32 64, %s183
        %s185 = smul.u32 %s184, 2
        %p186 = scmp.lt.s32.totalorder %s180, 37
        %s187 = scalar_select %p186, %s180, 37
        %s188 = smul.addr %s187, 2
        %s189 = smul.addr %s188, 4
        %s190 = scalar_lea.vmem %s0, %s189
        %p191 = pneg %p38
        %p192 = pneg %p35
        %s193 = smul.u32 16, %s17
        %p194 = scmp.lt.s32.totalorder %s193, 47
        %s195 = scalar_select %p194, %s193, 47
        %s196 = smul.addr %s195, 8
        %s197 = scalar_lea.vmem %s1, %s196
        %p198 = pneg %p64
        %p199 = pneg %p61
        %s200 = smul.u32 16, %s17
        %p201 = scmp.lt.s32.totalorder %s200, 47
        %s202 = scalar_select %p201, %s200, 47
        %s203 = smul.addr %s202, 8
        %s204 = scalar_lea.vmem %s2, %s203
        %p205 = pneg %p90
        %p206 = pneg %p87
        %p207 = pneg %p116
        %p208 = pneg %p113
        %s209 = sand.u32 %s103, 1
        %s210 = scalar_lea.sflag [#allocation3], %s209
        %s211 = sand.u32 %s103, 1
        %s212 = smul.addr %s211, 8
        %s213 = scalar_lea.vmem [#allocation2], %s212
        %s214 = smul.u32 16, %s17
        %s215 = ssub.s32 38, %s214
        %p216 = scmp.lt.s32.totalorder %s215, 16
        %s217 = scalar_select %p216, %s215, 16
        %s218 = smul.u32 64, %s217
        %s219 = smul.u32 %s218, 2
        %p220 = scmp.lt.s32.totalorder %s214, 37
        %s221 = scalar_select %p220, %s214, 37
        %s222 = smul.addr %s221, 2
        %s223 = smul.addr %s222, 4
        %s224 = scalar_lea.vmem %s0, %s223
        %s225 = smul.u32 16, %s17
        %s226 = ssub.s32 38, %s225
        %p227 = scmp.lt.s32.totalorder %s226, 16
        %s228 = scalar_select %p227, %s226, 16
        %s229 = smul.u32 64, %s228
        %s230 = smul.u32 %s229, 2
        %s231 = smul.u32 16, %s17
        %p232 = scmp.lt.s32.totalorder %s231, 47
        %s233 = scalar_select %p232, %s231, 47
        %s234 = smul.addr %s233, 8
        %s235 = scalar_lea.vmem %s1, %s234
        %s236 = smul.u32 16, %s17
        %s237 = smul.u32 16, %s17
        %p238 = scmp.lt.s32.totalorder %s237, 47
        %s239 = scalar_select %p238, %s237, 47
        %s240 = smul.addr %s239, 8
        %s241 = scalar_lea.vmem %s2, %s240
        %s242 = smul.u32 16, %s17
        %v243 = vld [vmem:[%s224] sm:$0xff]
        %v244 = vld [vmem:[%s224 + $0x8] sm:$0xff]
        %v245 = vld [vmem:[%s224 + $0x10] sm:$0xff]
        %v246 = vld [vmem:[%s224 + $0x18] sm:$0xff]
        %v247 = vld [vmem:[%s224 + $0x20] sm:$0xff]
        %v248 = vld [vmem:[%s224 + $0x28] sm:$0xff]
        %v249 = vld [vmem:[%s224 + $0x30] sm:$0xff]
        %v250 = vld [vmem:[%s224 + $0x38] sm:$0xff]
        %v251 = vld [vmem:[%s224 + $0x40] sm:$0xff]
        %v252 = vld [vmem:[%s224 + $0x48] sm:$0xff]
        %v253 = vld [vmem:[%s224 + $0x50] sm:$0xff]
        %v254 = vld [vmem:[%s224 + $0x58] sm:$0xff]
        %v255 = vld [vmem:[%s224 + $0x60] sm:$0xff]
        %v256 = vld [vmem:[%s224 + $0x68] sm:$0xff]
        %v257 = vld [vmem:[%s224 + $0x70] sm:$0xff]
        %v258 = vld [vmem:[%s224 + $0x78] sm:$0xff]
        %v259 = vunpack.c.l.bf16 %v243
        %v260 = vunpack.c.h.bf16 %v243
        %v261 = vunpack.c.l.bf16 %v244
        %v262 = vunpack.c.h.bf16 %v244
        %v263 = vunpack.c.l.bf16 %v245
        %v264 = vunpack.c.h.bf16 %v245
        %v265 = vunpack.c.l.bf16 %v246
        %v266 = vunpack.c.h.bf16 %v246
        %v267 = vunpack.c.l.bf16 %v247
        %v268 = vunpack.c.h.bf16 %v247
        %v269 = vunpack.c.l.bf16 %v248
        %v270 = vunpack.c.h.bf16 %v248
        %v271 = vunpack.c.l.bf16 %v249
        %v272 = vunpack.c.h.bf16 %v249
        %v273 = vunpack.c.l.bf16 %v250
        %v274 = vunpack.c.h.bf16 %v250
        %v275 = vunpack.c.l.bf16 %v251
        %v276 = vunpack.c.h.bf16 %v251
        %v277 = vunpack.c.l.bf16 %v252
        %v278 = vunpack.c.h.bf16 %v252
        %v279 = vunpack.c.l.bf16 %v253
        %v280 = vunpack.c.h.bf16 %v253
        %v281 = vunpack.c.l.bf16 %v254
        %v282 = vunpack.c.h.bf16 %v254
        %v283 = vunpack.c.l.bf16 %v255
        %v284 = vunpack.c.h.bf16 %v255
        %v285 = vunpack.c.l.bf16 %v256
        %v286 = vunpack.c.h.bf16 %v256
        %v287 = vunpack.c.l.bf16 %v257
        %v288 = vunpack.c.h.bf16 %v257
        %v289 = vunpack.c.l.bf16 %v258
        %v290 = vunpack.c.h.bf16 %v258
        %v291 = vmax.f32 %v259, %v260
        %292 = vmax.xlane.f32.xlu0 %v291
        %v293 = vpop.xlane.xlu0 %292
        %v294 = vmax.f32 %v261, %v262
        %295 = vmax.xlane.f32.xlu0 %v294
        %v296 = vpop.xlane.xlu0 %295
        %v297 = vmax.f32 %v263, %v264
        %298 = vmax.xlane.f32.xlu0 %v297
        %v299 = vpop.xlane.xlu0 %298
        %v300 = vmax.f32 %v265, %v266
        %301 = vmax.xlane.f32.xlu0 %v300
        %v302 = vpop.xlane.xlu0 %301
        %v303 = vmax.f32 %v267, %v268
        %304 = vmax.xlane.f32.xlu0 %v303
        %v305 = vpop.xlane.xlu0 %304
        %v306 = vmax.f32 %v269, %v270
        %307 = vmax.xlane.f32.xlu0 %v306
        %v308 = vpop.xlane.xlu0 %307
        %v309 = vmax.f32 %v271, %v272
        %310 = vmax.xlane.f32.xlu0 %v309
        %v311 = vpop.xlane.xlu0 %310
        %v312 = vmax.f32 %v273, %v274
        %313 = vmax.xlane.f32.xlu0 %v312
        %v314 = vpop.xlane.xlu0 %313
        %v315 = vmax.f32 %v275, %v276
        %316 = vmax.xlane.f32.xlu0 %v315
        %v317 = vpop.xlane.xlu0 %316
        %v318 = vmax.f32 %v277, %v278
        %319 = vmax.xlane.f32.xlu0 %v318
        %v320 = vpop.xlane.xlu0 %319
        %v321 = vmax.f32 %v279, %v280
        %322 = vmax.xlane.f32.xlu0 %v321
        %v323 = vpop.xlane.xlu0 %322
        %v324 = vmax.f32 %v281, %v282
        %325 = vmax.xlane.f32.xlu0 %v324
        %v326 = vpop.xlane.xlu0 %325
        %v327 = vmax.f32 %v283, %v284
        %328 = vmax.xlane.f32.xlu0 %v327
        %v329 = vpop.xlane.xlu0 %328
        %v330 = vmax.f32 %v285, %v286
        %331 = vmax.xlane.f32.xlu0 %v330
        %v332 = vpop.xlane.xlu0 %331
        %v333 = vmax.f32 %v287, %v288
        %334 = vmax.xlane.f32.xlu0 %v333
        %v335 = vpop.xlane.xlu0 %334
        %v336 = vmax.f32 %v289, %v290
        %337 = vmax.xlane.f32.xlu0 %v336
        %v338 = vpop.xlane.xlu0 %337
        %v339 = vsub.f32 %v259, %v293
        %v340 = vsub.f32 %v260, %v293
        %v341 = vsub.f32 %v261, %v296
        %v342 = vsub.f32 %v262, %v296
        %v343 = vsub.f32 %v263, %v299
        %v344 = vsub.f32 %v264, %v299
        %v345 = vsub.f32 %v265, %v302
        %v346 = vsub.f32 %v266, %v302
        %v347 = vsub.f32 %v267, %v305
        %v348 = vsub.f32 %v268, %v305
        %v349 = vsub.f32 %v269, %v308
        %v350 = vsub.f32 %v270, %v308
        %v351 = vsub.f32 %v271, %v311
        %v352 = vsub.f32 %v272, %v311
        %v353 = vsub.f32 %v273, %v314
        %v354 = vsub.f32 %v274, %v314
        %v355 = vsub.f32 %v275, %v317
        %v356 = vsub.f32 %v276, %v317
        %v357 = vsub.f32 %v277, %v320
        %v358 = vsub.f32 %v278, %v320
        %v359 = vsub.f32 %v279, %v323
        %v360 = vsub.f32 %v280, %v323
        %v361 = vsub.f32 %v281, %v326
        %v362 = vsub.f32 %v282, %v326
        %v363 = vsub.f32 %v283, %v329
        %v364 = vsub.f32 %v284, %v329
        %v365 = vsub.f32 %v285, %v332
        %v366 = vsub.f32 %v286, %v332
        %v367 = vsub.f32 %v287, %v335
        %v368 = vsub.f32 %v288, %v335
        %v369 = vsub.f32 %v289, %v338
        %v370 = vsub.f32 %v290, %v338
        %v371 = vmul.f32 %v339, 1.442695
        %v372 = vpow.pop %v371
        %v373 = vmul.f32 %v340, 1.442695
        %v374 = vpow.pop %v373
        %v375 = vmul.f32 %v341, 1.442695
        %v376 = vpow.pop %v375
        %v377 = vmul.f32 %v342, 1.442695
        %v378 = vpow.pop %v377
        %v379 = vmul.f32 %v343, 1.442695
        %v380 = vpow.pop %v379
        %v381 = vmul.f32 %v344, 1.442695
        %v382 = vpow.pop %v381
        %v383 = vmul.f32 %v345, 1.442695
        %v384 = vpow.pop %v383
        %v385 = vmul.f32 %v346, 1.442695
        %v386 = vpow.pop %v385
        %v387 = vmul.f32 %v347, 1.442695
        %v388 = vpow.pop %v387
        %v389 = vmul.f32 %v348, 1.442695
        %v390 = vpow.pop %v389
        %v391 = vmul.f32 %v349, 1.442695
        %v392 = vpow.pop %v391
        %v393 = vmul.f32 %v350, 1.442695
        %v394 = vpow.pop %v393
        %v395 = vmul.f32 %v351, 1.442695
        %v396 = vpow.pop %v395
        %v397 = vmul.f32 %v352, 1.442695
        %v398 = vpow.pop %v397
        %v399 = vmul.f32 %v353, 1.442695
        %v400 = vpow.pop %v399
        %v401 = vmul.f32 %v354, 1.442695
        %v402 = vpow.pop %v401
        %v403 = vmul.f32 %v355, 1.442695
        %v404 = vpow.pop %v403
        %v405 = vmul.f32 %v356, 1.442695
        %v406 = vpow.pop %v405
        %v407 = vmul.f32 %v357, 1.442695
        %v408 = vpow.pop %v407
        %v409 = vmul.f32 %v358, 1.442695
        %v410 = vpow.pop %v409
        %v411 = vmul.f32 %v359, 1.442695
        %v412 = vpow.pop %v411
        %v413 = vmul.f32 %v360, 1.442695
        %v414 = vpow.pop %v413
        %v415 = vmul.f32 %v361, 1.442695
        %v416 = vpow.pop %v415
        %v417 = vmul.f32 %v362, 1.442695
        %v418 = vpow.pop %v417
        %v419 = vmul.f32 %v363, 1.442695
        %v420 = vpow.pop %v419
        %v421 = vmul.f32 %v364, 1.442695
        %v422 = vpow.pop %v421
        %v423 = vmul.f32 %v365, 1.442695
        %v424 = vpow.pop %v423
        %v425 = vmul.f32 %v366, 1.442695
        %v426 = vpow.pop %v425
        %v427 = vmul.f32 %v367, 1.442695
        %v428 = vpow.pop %v427
        %v429 = vmul.f32 %v368, 1.442695
        %v430 = vpow.pop %v429
        %v431 = vmul.f32 %v369, 1.442695
        %v432 = vpow.pop %v431
        %v433 = vmul.f32 %v370, 1.442695
        %v434 = vpow.pop %v433
        %v435 = vadd.f32 %v372, %v374
        %436 = vadd.xlane.f32.xlu0 %v435
        %v437 = vpop.xlane.xlu0 %436
        %v438 = vadd.f32 %v376, %v378
        %439 = vadd.xlane.f32.xlu0 %v438
        %v440 = vpop.xlane.xlu0 %439
        %v441 = vadd.f32 %v380, %v382
        %442 = vadd.xlane.f32.xlu0 %v441
        %v443 = vpop.xlane.xlu0 %442
        %v444 = vadd.f32 %v384, %v386
        %445 = vadd.xlane.f32.xlu0 %v444
        %v446 = vpop.xlane.xlu0 %445
        %v447 = vadd.f32 %v388, %v390
        %448 = vadd.xlane.f32.xlu0 %v447
        %v449 = vpop.xlane.xlu0 %448
        %v450 = vadd.f32 %v392, %v394
        %451 = vadd.xlane.f32.xlu0 %v450
        %v452 = vpop.xlane.xlu0 %451
        %v453 = vadd.f32 %v396, %v398
        %454 = vadd.xlane.f32.xlu0 %v453
        %v455 = vpop.xlane.xlu0 %454
        %v456 = vadd.f32 %v400, %v402
        %457 = vadd.xlane.f32.xlu0 %v456
        %v458 = vpop.xlane.xlu0 %457
        %v459 = vadd.f32 %v404, %v406
        %460 = vadd.xlane.f32.xlu0 %v459
        %v461 = vpop.xlane.xlu0 %460
        %v462 = vadd.f32 %v408, %v410
        %463 = vadd.xlane.f32.xlu0 %v462
        %v464 = vpop.xlane.xlu0 %463
        %v465 = vadd.f32 %v412, %v414
        %466 = vadd.xlane.f32.xlu0 %v465
        %v467 = vpop.xlane.xlu0 %466
        %v468 = vadd.f32 %v416, %v418
        %469 = vadd.xlane.f32.xlu0 %v468
        %v470 = vpop.xlane.xlu0 %469
        %v471 = vadd.f32 %v420, %v422
        %472 = vadd.xlane.f32.xlu0 %v471
        %v473 = vpop.xlane.xlu0 %472
        %v474 = vadd.f32 %v424, %v426
        %475 = vadd.xlane.f32.xlu0 %v474
        %v476 = vpop.xlane.xlu0 %475
        %v477 = vadd.f32 %v428, %v430
        %478 = vadd.xlane.f32.xlu0 %v477
        %v479 = vpop.xlane.xlu0 %478
        %v480 = vadd.f32 %v432, %v434
        %481 = vadd.xlane.f32.xlu0 %v480
        %v482 = vpop.xlane.xlu0 %481
        %v483 = vlog2.pop %v437
        %v484 = vmul.f32 %v483, 0.6931472
        %v485 = vlog2.pop %v440
        %v486 = vmul.f32 %v485, 0.6931472
        %v487 = vlog2.pop %v443
        %v488 = vmul.f32 %v487, 0.6931472
        %v489 = vlog2.pop %v446
        %v490 = vmul.f32 %v489, 0.6931472
        %v491 = vlog2.pop %v449
        %v492 = vmul.f32 %v491, 0.6931472
        %v493 = vlog2.pop %v452
        %v494 = vmul.f32 %v493, 0.6931472
        %v495 = vlog2.pop %v455
        %v496 = vmul.f32 %v495, 0.6931472
        %v497 = vlog2.pop %v458
        %v498 = vmul.f32 %v497, 0.6931472
        %v499 = vlog2.pop %v461
        %v500 = vmul.f32 %v499, 0.6931472
        %v501 = vlog2.pop %v464
        %v502 = vmul.f32 %v501, 0.6931472
        %v503 = vlog2.pop %v467
        %v504 = vmul.f32 %v503, 0.6931472
        %v505 = vlog2.pop %v470
        %v506 = vmul.f32 %v505, 0.6931472
        %v507 = vlog2.pop %v473
        %v508 = vmul.f32 %v507, 0.6931472
        %v509 = vlog2.pop %v476
        %v510 = vmul.f32 %v509, 0.6931472
        %v511 = vlog2.pop %v479
        %v512 = vmul.f32 %v511, 0.6931472
        %v513 = vlog2.pop %v482
        %v514 = vmul.f32 %v513, 0.6931472
        %v515 = vadd.f32 %v293, %v484
        %v516 = vadd.f32 %v296, %v486
        %v517 = vadd.f32 %v299, %v488
        %v518 = vadd.f32 %v302, %v490
        %v519 = vadd.f32 %v305, %v492
        %v520 = vadd.f32 %v308, %v494
        %v521 = vadd.f32 %v311, %v496
        %v522 = vadd.f32 %v314, %v498
        %v523 = vadd.f32 %v317, %v500
        %v524 = vadd.f32 %v320, %v502
        %v525 = vadd.f32 %v323, %v504
        %v526 = vadd.f32 %v326, %v506
        %v527 = vadd.f32 %v329, %v508
        %v528 = vadd.f32 %v332, %v510
        %v529 = vadd.f32 %v335, %v512
        %v530 = vadd.f32 %v338, %v514
        %v531 = vld [vmem:[%s241] sm:$0xff]
        %v532 = vld [vmem:[%s241 + $0x8] sm:$0xff]
        %v533 = vld [vmem:[%s241 + $0x10] sm:$0xff]
        %v534 = vld [vmem:[%s241 + $0x18] sm:$0xff]
        %v535 = vld [vmem:[%s241 + $0x20] sm:$0xff]
        %v536 = vld [vmem:[%s241 + $0x28] sm:$0xff]
        %v537 = vld [vmem:[%s241 + $0x30] sm:$0xff]
        %v538 = vld [vmem:[%s241 + $0x38] sm:$0xff]
        %v539 = vld [vmem:[%s241 + $0x40] sm:$0xff]
        %v540 = vld [vmem:[%s241 + $0x48] sm:$0xff]
        %v541 = vld [vmem:[%s241 + $0x50] sm:$0xff]
        %v542 = vld [vmem:[%s241 + $0x58] sm:$0xff]
        %v543 = vld [vmem:[%s241 + $0x60] sm:$0xff]
        %v544 = vld [vmem:[%s241 + $0x68] sm:$0xff]
        %v545 = vld [vmem:[%s241 + $0x70] sm:$0xff]
        %v546 = vld [vmem:[%s241 + $0x78] sm:$0xff]
        %vm547 = vcmp.gt.f32.partialorder %v531, 0.0
        %vm548 = vcmp.gt.f32.partialorder %v532, 0.0
        %vm549 = vcmp.gt.f32.partialorder %v533, 0.0
        %vm550 = vcmp.gt.f32.partialorder %v534, 0.0
        %vm551 = vcmp.gt.f32.partialorder %v535, 0.0
        %vm552 = vcmp.gt.f32.partialorder %v536, 0.0
        %vm553 = vcmp.gt.f32.partialorder %v537, 0.0
        %vm554 = vcmp.gt.f32.partialorder %v538, 0.0
        %vm555 = vcmp.gt.f32.partialorder %v539, 0.0
        %vm556 = vcmp.gt.f32.partialorder %v540, 0.0
        %vm557 = vcmp.gt.f32.partialorder %v541, 0.0
        %vm558 = vcmp.gt.f32.partialorder %v542, 0.0
        %vm559 = vcmp.gt.f32.partialorder %v543, 0.0
        %vm560 = vcmp.gt.f32.partialorder %v544, 0.0
        %vm561 = vcmp.gt.f32.partialorder %v545, 0.0
        %vm562 = vcmp.gt.f32.partialorder %v546, 0.0
        %v563 = vld [vmem:[%s235] sm:$0xff]
        %v564 = vld [vmem:[%s235 + $0x8] sm:$0xff]
        %v565 = vld [vmem:[%s235 + $0x10] sm:$0xff]
        %v566 = vld [vmem:[%s235 + $0x18] sm:$0xff]
        %v567 = vld [vmem:[%s235 + $0x20] sm:$0xff]
        %v568 = vld [vmem:[%s235 + $0x28] sm:$0xff]
        %v569 = vld [vmem:[%s235 + $0x30] sm:$0xff]
        %v570 = vld [vmem:[%s235 + $0x38] sm:$0xff]
        %v571 = vld [vmem:[%s235 + $0x40] sm:$0xff]
        %v572 = vld [vmem:[%s235 + $0x48] sm:$0xff]
        %v573 = vld [vmem:[%s235 + $0x50] sm:$0xff]
        %v574 = vld [vmem:[%s235 + $0x58] sm:$0xff]
        %v575 = vld [vmem:[%s235 + $0x60] sm:$0xff]
        %v576 = vld [vmem:[%s235 + $0x68] sm:$0xff]
        %v577 = vld [vmem:[%s235 + $0x70] sm:$0xff]
        %v578 = vld [vmem:[%s235 + $0x78] sm:$0xff]
        %v579 = vsub.f32 %v515, %v563
        %v580 = vsub.f32 %v516, %v564
        %v581 = vsub.f32 %v517, %v565
        %v582 = vsub.f32 %v518, %v566
        %v583 = vsub.f32 %v519, %v567
        %v584 = vsub.f32 %v520, %v568
        %v585 = vsub.f32 %v521, %v569
        %v586 = vsub.f32 %v522, %v570
        %v587 = vsub.f32 %v523, %v571
        %v588 = vsub.f32 %v524, %v572
        %v589 = vsub.f32 %v525, %v573
        %v590 = vsub.f32 %v526, %v574
        %v591 = vsub.f32 %v527, %v575
        %v592 = vsub.f32 %v528, %v576
        %v593 = vsub.f32 %v529, %v577
        %v594 = vsub.f32 %v530, %v578
        %v595 = vsel %vm547, %v579, 0.0
        %v596 = vsel %vm548, %v580, 0.0
        %v597 = vsel %vm549, %v581, 0.0
        %v598 = vsel %vm550, %v582, 0.0
        %v599 = vsel %vm551, %v583, 0.0
        %v600 = vsel %vm552, %v584, 0.0
        %v601 = vsel %vm553, %v585, 0.0
        %v602 = vsel %vm554, %v586, 0.0
        %v603 = vsel %vm555, %v587, 0.0
        %v604 = vsel %vm556, %v588, 0.0
        %v605 = vsel %vm557, %v589, 0.0
        %v606 = vsel %vm558, %v590, 0.0
        %v607 = vsel %vm559, %v591, 0.0
        %v608 = vsel %vm560, %v592, 0.0
        %v609 = vsel %vm561, %v593, 0.0
        %v610 = vsel %vm562, %v594, 0.0
        %vm611 = vcmask 7168
        %v612 = vsel %vm611, %v595, 0.0
        %v613 = vsel %vm611, %v596, 0.0
        %v614 = vadd.f32 %v612, %v613
        %v615 = vsel %vm611, %v597, 0.0
        %v616 = vadd.f32 %v614, %v615
        %v617 = vsel %vm611, %v598, 0.0
        %v618 = vadd.f32 %v616, %v617
        %v619 = vsel %vm611, %v599, 0.0
        %v620 = vadd.f32 %v618, %v619
        %v621 = vsel %vm611, %v600, 0.0
        %v622 = vadd.f32 %v620, %v621
        %v623 = vsel %vm611, %v601, 0.0
        %v624 = vadd.f32 %v622, %v623
        %v625 = vsel %vm611, %v602, 0.0
        %v626 = vadd.f32 %v624, %v625
        %v627 = vsel %vm611, %v603, 0.0
        %v628 = vadd.f32 %v626, %v627
        %v629 = vsel %vm611, %v604, 0.0
        %v630 = vadd.f32 %v628, %v629
        %v631 = vsel %vm611, %v605, 0.0
        %v632 = vadd.f32 %v630, %v631
        %v633 = vsel %vm611, %v606, 0.0
        %v634 = vadd.f32 %v632, %v633
        %v635 = vsel %vm611, %v607, 0.0
        %v636 = vadd.f32 %v634, %v635
        %v637 = vsel %vm611, %v608, 0.0
        %v638 = vadd.f32 %v636, %v637
        %v639 = vsel %vm611, %v609, 0.0
        %v640 = vadd.f32 %v638, %v639
        %v641 = vsel %vm611, %v610, 0.0
        %v642 = vadd.f32 %v640, %v641
        %643 = vadd.xlane.f32.xlu0 %v642
        %v644 = vpop.xlane.xlu0 %643
        %v645 = vrot.slane %v644, 4
        %v646 = vadd.f32 %v644, %v645
        %v647 = vrot.slane %v646, 2
        %v648 = vadd.f32 %v646, %v647
        %v649 = vrot.slane %v648, 1
        %v650 = vadd.f32 %v648, %v649
        %s651 = vtos %v650
        %v652 = vstv %s651
        %653 = vst [vmem:[%s213] sm:$0xff] %v652
        %s654 = sand.u32 %s103, 1
        %s655 = scalar_lea.sflag [#allocation3], %s654
        %s656 = sand.u32 %s103, 1
        %s657 = smul.addr %s656, 8
        %s658 = scalar_lea.vmem [#allocation2], %s657
        // Predicated region
        $region33: #{tpu_custom_call.1} parent=31 // pred_check
          %p659 = pneg %p113
        $region34: #{tpu_custom_call.1} parent=31 // pred_check_branch
          %661 = sbr.rel (%p659) target = $region36
        $region35: #{tpu_custom_call.1} parent=31 // pred_region
          %s663 = ssub.s32 128, 128
          %664 = vsyncadd %s655, %s663
          %s665 = smul.addr %s17, 128
          %s666 = scalar_lea.hbm %s3, %s665
          %s668 = sshll.u32 %s658, 4
          %s669 = int_to_ptr.vmem [resolvable:$true] %s668
          %671 = dma.vmem_to_hbm [thread:$0]  %s669, 128, %s666, %s655
        $region36: #{tpu_custom_call.1} parent=31 // pred_fallthru
          _
      $region32: #{tpu_custom_call.1} parent=5 // pred_fallthru
        _
      %p672 = scmp.le.s32.totalorder 2, %s12
      // Predicated region
      $region37: #{tpu_custom_call.1} parent=5 // pred_check
        %p673 = pneg %p672
      $region38: #{tpu_custom_call.1} parent=5 // pred_check_branch
        %675 = sbr.rel (%p673) target = $region40
      $region39: #{tpu_custom_call.1} parent=5 // pred_region
        %s676 = ssub.s32 %s12, 2
        // Predicated region
        $region41: #{tpu_custom_call.1} parent=39 // pred_check
          %p677 = pneg %p119
        $region42: #{tpu_custom_call.1} parent=39 // pred_check_branch
          %679 = sbr.rel (%p677) target = $region44
        $region43: #{tpu_custom_call.1} parent=39 // pred_region
          %s680 = sand.u32 %s104, 1
          %s681 = scalar_lea.sflag [#allocation3], %s680
          %s682 = sand.u32 %s104, 1
          %s683 = smul.addr %s682, 8
          %s684 = scalar_lea.vmem [#allocation2], %s683
          %685 = dma.done %s681, 128
        $region44: #{tpu_custom_call.1} parent=39 // pred_fallthru
          _
      $region40: #{tpu_custom_call.1} parent=5 // pred_fallthru
        _
    $region6: #{tpu_custom_call.1} parent=1 // loop_footer
      %s16 = sadd.s32 1, %s12
    $region7: #{tpu_custom_call.1} parent=1 // loop_footer_branch
      %11 = sbr.rel target = $region3
    $region8: #{tpu_custom_call.1} parent=1 // loop_exit
      _
    %686 = vsyncpa [#allocation3], 1
    %s687 = scalar_lea.sflag [#allocation3], 1
    %688 = vsyncpa %s687, 1

</llo_original>
